<compile_context>
chip_gen: v5e
topology: v5e:2x2
jax: 0.10.0
libtpu: 0.0.40
codegen_flags: <defaults>
</compile_context>

<pallas_src>
import math

import jax
import jax.numpy as jnp
from jax import lax
from jax.experimental import pallas as pl
from jax.experimental.pallas import tpu as pltpu


def _mhca_kernel(q_ref, k_ref, v_ref, wo_ref, bo_ref, out_ref, acc_ref):
    # Grid: (batch, q_tiles, heads); heads is the innermost reduction axis.
    h = pl.program_id(2)

    @pl.when(h == 0)
    def _init():
        acc_ref[...] = jnp.zeros_like(acc_ref)

    q = q_ref[...]                                  # (block_q, head_dim) bf16, pre-scaled
    k = k_ref[...]                                  # (seq_s,  head_dim) bf16
    v = v_ref[...]                                  # (seq_s,  head_dim) bf16

    # scores = q @ k^T with the transpose absorbed into the contraction
    # (contract head_dim of both operands) — no explicit XLU transpose.
    scores = lax.dot_general(q, k, (((1,), (1,)), ((), ())),
                             preferred_element_type=jnp.float32)  # (block_q, seq_s) f32

    # Numerically-stable softmax along keys, kept in f32; probability tile is
    # emitted directly in bf16 (no extra f32 copy on the VPU path).
    m = jnp.max(scores, axis=-1, keepdims=True)
    e = jnp.exp(scores - m)
    inv = pl.reciprocal(jnp.sum(e, axis=-1, keepdims=True), approx=True)
    p = (e * inv).astype(jnp.bfloat16)              # (block_q, seq_s)

    # TODO(synk): attention dropout is identity (eval-mode semantics).

    ctx = jnp.dot(p, v, preferred_element_type=jnp.float32)        # (block_q, head_dim)

    # Per-head contribution to the output projection; Wo is resident in VMEM
    # for the whole kernel, indexed per head here (dynamic first-axis index).
    acc_ref[...] += jnp.dot(ctx.astype(jnp.bfloat16), wo_ref[h],
                            preferred_element_type=jnp.float32)    # (block_q, hidden)

    @pl.when(h == pl.num_programs(2) - 1)
    def _finalize():
        out_ref[...] = (acc_ref[...] + bo_ref[...]).astype(out_ref.dtype)


def _vmem_limit_bytes():
    """Per-generation scoped-VMEM limit with headroom for Mosaic scratch."""
    try:
        cap = int(pltpu.get_tpu_info().vmem_capacity_bytes)
    except Exception:
        cap = 64 * 1024 * 1024                     # conservative (v7x-sized) fallback
    return (cap * 3) // 4                          # ~48 MiB on v7x, ~96 MiB on v5e/v6e


def _pick_block_q(batch, seq_t, seq_s, head_dim, hidden, num_heads,
                  out_itemsize, budget):
    """Largest q-tile dividing seq_t whose live VMEM footprint fits `budget`."""

    def estimate(bq):
        scores = 14 * bq * seq_s                   # ~3 f32 + 1 bf16 (bq, seq_s) temporaries
        acc = 4 * bq * hidden                      # f32 accumulator scratch
        q_blk = 2 * (2 * bq * head_dim)            # bf16 q tile, double-buffered
        kv_blk = 2 * (2 * 2 * seq_s * head_dim)    # bf16 k + v tiles, double-buffered
        wo_res = 2 * num_heads * head_dim * hidden  # bf16 Wo, resident
        out_blk = 2 * out_itemsize * bq * hidden   # output tile, double-buffered
        return scores + acc + q_blk + kv_blk + wo_res + out_blk + (1 << 20)

    picked = seq_t
    for cand in (1024, 512, 256, 128, 64, 32, 16, 8):
        if cand <= seq_t and seq_t % cand == 0 and estimate(cand) <= budget:
            picked = cand
            break

    # v7x megacore: keep >= 2 programs on the "parallel" (batch, q_tile) axes
    # so both TensorCores get work.
    while batch * (seq_t // picked) < 2 and picked % 2 == 0 and picked >= 16:
        picked //= 2
    return picked


def _single_buffered_spec(block_shape, index_map):
    """BlockSpec for constant-index (kernel-resident) blocks: no second pipeline
    buffer.  Falls back to the default if this JAX lacks pipeline_mode."""
    try:
        return pl.BlockSpec(block_shape, index_map, pipeline_mode=pl.Buffered(1))
    except (TypeError, AttributeError):
        return pl.BlockSpec(block_shape, index_map)


def multi_head_cross_attention(target, source, params, *, num_heads, block_q=None):
    batch, seq_t, hidden = target.shape
    _, seq_s, _ = source.shape
    assert hidden % num_heads == 0
    head_dim = hidden // num_heads
    wq, bq_, wk, bk, wv, bv, wo, bo = params
    scale = 1.0 / math.sqrt(head_dim)

    # ---- Hoisted Q/K/V projections: one full-width XLA GEMM each (done once,
    # not per q-tile per head).  Scale folded into Wq/bq (a one-off weight
    # scale, not a per-activation multiply). ---------------------------------
    q = target @ (wq * scale) + bq_[0] * scale         # (B, seq_t, hidden) f32
    k = source @ wk + bk[0]                            # (B, seq_s, hidden) f32
    v = source @ wv + bv[0]

    def head_major(x, s):                              # -> (B, H, s, head_dim) bf16
        return (x.reshape(batch, s, num_heads, head_dim)
                 .transpose(0, 2, 1, 3).astype(jnp.bfloat16))

    qh = head_major(q, seq_t)
    kh = head_major(k, seq_s)
    vh = head_major(v, seq_s)

    wo_r = wo.reshape(num_heads, head_dim, hidden).astype(jnp.bfloat16)
    bo_r = bo.astype(jnp.float32)                      # (1, hidden)

    vmem_limit = _vmem_limit_bytes()
    out_itemsize = jnp.dtype(target.dtype).itemsize
    if block_q is None:
        block_q = _pick_block_q(batch, seq_t, seq_s, head_dim, hidden, num_heads,
                                out_itemsize, vmem_limit)
    assert seq_t % block_q == 0
    grid = (batch, seq_t // block_q, num_heads)

    q_spec = pl.BlockSpec((None, None, block_q, head_dim),
                          lambda b, qi, h: (b, h, qi, 0))
    kv_spec = pl.BlockSpec((None, None, seq_s, head_dim),
                           lambda b, qi, h: (b, h, 0, 0))
    # Wo / bo: constant index map -> DMA'd once, resident for the whole kernel.
    wo_spec = _single_buffered_spec((num_heads, head_dim, hidden),
                                    lambda b, qi, h: (0, 0, 0))
    bo_spec = _single_buffered_spec((1, hidden), lambda b, qi, h: (0, 0))
    out_spec = pl.BlockSpec((None, block_q, hidden), lambda b, qi, h: (b, qi, 0))

    return pl.pallas_call(
        _mhca_kernel,
        out_shape=jax.ShapeDtypeStruct((batch, seq_t, hidden), target.dtype),
        grid_spec=pltpu.PrefetchScalarGridSpec(
            num_scalar_prefetch=0,
            grid=grid,
            in_specs=[q_spec, kv_spec, kv_spec, wo_spec, bo_spec],
            out_specs=out_spec,
            scratch_shapes=[pltpu.VMEM((block_q, hidden), jnp.float32)]),
        compiler_params=pltpu.CompilerParams(
            dimension_semantics=("parallel", "parallel", "arbitrary"),
            vmem_limit_bytes=vmem_limit),
    )(qh, kh, vh, wo_r, bo_r)


def _reference(target, source, params, *, num_heads):
    """Pure-JAX f32 reference mirroring the PyTorch forward (dropout = identity)."""
    wq, bq, wk, bk, wv, bv, wo, bo = params
    batch, seq_t, hidden = target.shape
    _, seq_s, _ = source.shape
    head_dim = hidden // num_heads
    q = target @ wq + bq[0]
    k = source @ wk + bk[0]
    v = source @ wv + bv[0]

    def split(x, s):
        return x.reshape(batch, s, num_heads, head_dim).transpose(0, 2, 1, 3)

    qh, kh, vh = split(q, seq_t), split(k, seq_s), split(v, seq_s)
    attn = jnp.einsum("bhqd,bhkd->bhqk", qh, kh) / math.sqrt(head_dim)
    attn = jax.nn.softmax(attn, axis=-1)
    out = jnp.einsum("bhqk,bhkd->bhqd", attn, vh)
    out = out.transpose(0, 2, 1, 3).reshape(batch, seq_t, hidden)
    return out @ wo + bo[0]


def _make_params(key, hidden):
    """Deterministic torch-nn.Linear-like uniform init."""
    bound = 1.0 / math.sqrt(hidden)
    keys = jax.random.split(key, 8)

    def lin(kw, kb):
        w = jax.random.uniform(kw, (hidden, hidden), jnp.float32, -bound, bound)
        b = jax.random.uniform(kb, (1, hidden), jnp.float32, -bound, bound)
        return w, b

    wq, bq = lin(keys[0], keys[1])
    wk, bk = lin(keys[2], keys[3])
    wv, bv = lin(keys[4], keys[5])
    wo, bo = lin(keys[6], keys[7])
    return (wq, bq, wk, bk, wv, bv, wo, bo)


def _run_case(key, batch, seq_len, hidden, num_heads, block_q=None):
    k1, k2, k3 = jax.random.split(key, 3)
    target = jax.random.normal(k1, (batch, seq_len, hidden), dtype=jnp.float32)
    source = jax.random.normal(k2, (batch, seq_len, hidden), dtype=jnp.float32)
    params = _make_params(k3, hidden)

    out = multi_head_cross_attention(target, source, params,
                                     num_heads=num_heads, block_q=block_q)
    out = jax.block_until_ready(out)
    ref = _reference(target, source, params, num_heads=num_heads)
    assert out.shape == (batch, seq_len, hidden)
    # bf16 matmuls with f32 accumulation + approx reciprocal: loose tolerance.
    assert jnp.allclose(out, ref, atol=3e-2, rtol=3e-2), "mismatch vs reference"


if __name__ == "__main__":
    key = jax.random.PRNGKey(0)
    k_small, k_tiled = jax.random.split(key, 2)

    # Small shapes consistent with the module.
    _run_case(k_small, batch=2, seq_len=8, hidden=32, num_heads=4)

    # Tiled path: head_dim=64 (lane-aligned), q_tiles=2 with forced block_q.
    _run_case(k_tiled, batch=2, seq_len=256, hidden=256, num_heads=4, block_q=128)

    print("KERNEL_OK")
</pallas_src>

<mosaic_0001>
module attributes {stable_mosaic.version = 11 : i64} {
  func.func @_mhca_kernel(%arg0: i32, %arg1: i32, %arg2: i32, %arg3: memref<1x1x8x8xbf16, #tpu.memory_space<vmem>>, %arg4: memref<1x1x8x8xbf16, #tpu.memory_space<vmem>>, %arg5: memref<1x1x8x8xbf16, #tpu.memory_space<vmem>>, %arg6: memref<4x8x32xbf16, #tpu.memory_space<vmem>>, %arg7: memref<1x32xf32, #tpu.memory_space<vmem>>, %arg8: memref<1x8x32xf32, #tpu.memory_space<vmem>>, %arg9: memref<8x32xf32, #tpu.memory_space<vmem>>) attributes {dimension_semantics = [#tpu.dimension_semantics<parallel>, #tpu.dimension_semantics<parallel>, #tpu.dimension_semantics<arbitrary>], iteration_bounds = array<i64: 2, 1, 4>, scalar_prefetch = 0 : i64, scratch_operands = 1 : i64, tpu.core_type = #tpu.core_type<tc>, window_params = [{transform_indices = @transform_0, window_bounds = array<i64: 1, 1, 8, 8>}, {transform_indices = @transform_1, window_bounds = array<i64: 1, 1, 8, 8>}, {transform_indices = @transform_2, window_bounds = array<i64: 1, 1, 8, 8>}, {pipeline_mode = #tpu.pipeline_mode<synchronous>, transform_indices = @transform_3, window_bounds = array<i64: 4, 8, 32>}, {pipeline_mode = #tpu.pipeline_mode<synchronous>, transform_indices = @transform_4, window_bounds = array<i64: 1, 32>}, {transform_indices = @transform_5, window_bounds = array<i64: 1, 8, 32>}]} {
    %c0_i32 = arith.constant 0 : i32
    %0 = arith.cmpi eq, %arg2, %c0_i32 : i32
    %1 = arith.extui %0 : i1 to i32
    %c0_i32_0 = arith.constant 0 : i32
    %2 = arith.cmpi ne, %1, %c0_i32_0 : i32
    scf.if %2 {
      %cst_23 = arith.constant 0.000000e+00 : f32
      %33 = vector.broadcast %cst_23 : f32 to vector<8x32xf32>
      %c0_24 = arith.constant 0 : index
      %c0_25 = arith.constant 0 : index
      %34 = vector.load %arg9[%c0_24, %c0_25] : memref<8x32xf32, #tpu.memory_space<vmem>>, vector<8x32xf32>
      tpu.vector_store %arg9[%c0_24, %c0_25], %33 {strides = array<i32>} : memref<8x32xf32, #tpu.memory_space<vmem>>, vector<8x32xf32>,
    } else {
    }
    %c0 = arith.constant 0 : index
    %c0_1 = arith.constant 0 : index
    %c0_2 = arith.constant 0 : index
    %c0_3 = arith.constant 0 : index
    %3 = vector.load %arg3[%c0, %c0_1, %c0_2, %c0_3] : memref<1x1x8x8xbf16, #tpu.memory_space<vmem>>, vector<1x1x8x8xbf16>
    %4 = vector.shape_cast %3 : vector<1x1x8x8xbf16> to vector<8x8xbf16>
    %c0_4 = arith.constant 0 : index
    %c0_5 = arith.constant 0 : index
    %c0_6 = arith.constant 0 : index
    %c0_7 = arith.constant 0 : index
    %5 = vector.load %arg4[%c0_4, %c0_5, %c0_6, %c0_7] : memref<1x1x8x8xbf16, #tpu.memory_space<vmem>>, vector<1x1x8x8xbf16>
    %6 = vector.shape_cast %5 : vector<1x1x8x8xbf16> to vector<8x8xbf16>
    %c0_8 = arith.constant 0 : index
    %c0_9 = arith.constant 0 : index
    %c0_10 = arith.constant 0 : index
    %c0_11 = arith.constant 0 : index
    %7 = vector.load %arg5[%c0_8, %c0_9, %c0_10, %c0_11] : memref<1x1x8x8xbf16, #tpu.memory_space<vmem>>, vector<1x1x8x8xbf16>
    %8 = vector.shape_cast %7 : vector<1x1x8x8xbf16> to vector<8x8xbf16>
    %cst = arith.constant dense<0.000000e+00> : vector<8x8xf32>
    %9 = tpu.matmul %4, %6, %cst {dimension_numbers = #tpu.dot_dimension_numbers<[1], [1], [0], [0], [0, 0, 1, 0], [], []>} : vector<8x8xbf16>, vector<8x8xbf16>, vector<8x8xf32> -> vector<8x8xf32>
    %cst_12 = arith.constant dense<0xFF800000> : vector<8xf32>
    %10 = vector.multi_reduction <maximumf>, %9, %cst_12 [1] : vector<8x8xf32> to vector<8xf32>
    %11 = vector.shape_cast %10 : vector<8xf32> to vector<8x1xf32>
    %12 = vector.broadcast %11 : vector<8x1xf32> to vector<8x8xf32>
    %13 = arith.subf %9, %12 : vector<8x8xf32>
    %14 = math.exp %13 : vector<8x8xf32>
    %cst_13 = arith.constant dense<0.000000e+00> : vector<8xf32>
    %15 = vector.multi_reduction <add>, %14, %cst_13 [1] : vector<8x8xf32> to vector<8xf32>
    %16 = vector.shape_cast %15 : vector<8xf32> to vector<8x1xf32>
    %17 = tpu.reciprocal %16 {approx = true} : vector<8x1xf32> -> vector<8x1xf32>
    %18 = vector.broadcast %17 : vector<8x1xf32> to vector<8x8xf32>
    %19 = arith.mulf %14, %18 : vector<8x8xf32>
    %20 = arith.truncf %19 : vector<8x8xf32> to vector<8x8xbf16>
    %cst_14 = arith.constant dense<0.000000e+00> : vector<8x8xf32>
    %21 = tpu.matmul %20, %8, %cst_14 {dimension_numbers = #tpu.dot_dimension_numbers<[1], [0], [0], [1], [0, 0, 1, 1], [], []>} : vector<8x8xbf16>, vector<8x8xbf16>, vector<8x8xf32> -> vector<8x8xf32>
    %c0_15 = arith.constant 0 : index
    %c0_16 = arith.constant 0 : index
    %22 = vector.load %arg9[%c0_15, %c0_16] : memref<8x32xf32, #tpu.memory_space<vmem>>, vector<8x32xf32>
    %23 = arith.truncf %21 : vector<8x8xf32> to vector<8x8xbf16>
    %24 = arith.index_cast %arg2 : i32 to index
    %c0_17 = arith.constant 0 : index
    %c0_18 = arith.constant 0 : index
    %25 = vector.load %arg6[%24, %c0_17, %c0_18] : memref<4x8x32xbf16, #tpu.memory_space<vmem>>, vector<1x8x32xbf16>
    %26 = vector.shape_cast %25 : vector<1x8x32xbf16> to vector<8x32xbf16>
    %cst_19 = arith.constant dense<0.000000e+00> : vector<8x32xf32>
    %27 = tpu.matmul %23, %26, %cst_19 {dimension_numbers = #tpu.dot_dimension_numbers<[1], [0], [0], [1], [0, 0, 1, 1], [], []>} : vector<8x8xbf16>, vector<8x32xbf16>, vector<8x32xf32> -> vector<8x32xf32>
    %28 = arith.addf %22, %27 : vector<8x32xf32>
    %c0_20 = arith.constant 0 : index
    %c0_21 = arith.constant 0 : index
    %29 = vector.load %arg9[%c0_20, %c0_21] : memref<8x32xf32, #tpu.memory_space<vmem>>, vector<8x32xf32>
    tpu.vector_store %arg9[%c0_20, %c0_21], %28 {strides = array<i32>} : memref<8x32xf32, #tpu.memory_space<vmem>>, vector<8x32xf32>,
    %c3_i32 = arith.constant 3 : i32
    %30 = arith.cmpi eq, %arg2, %c3_i32 : i32
    %31 = arith.extui %30 : i1 to i32
    %c0_i32_22 = arith.constant 0 : i32
    %32 = arith.cmpi ne, %31, %c0_i32_22 : i32
    scf.if %32 {
      %c0_23 = arith.constant 0 : index
      %c0_24 = arith.constant 0 : index
      %33 = vector.load %arg9[%c0_23, %c0_24] : memref<8x32xf32, #tpu.memory_space<vmem>>, vector<8x32xf32>
      %c0_25 = arith.constant 0 : index
      %c0_26 = arith.constant 0 : index
      %34 = vector.load %arg7[%c0_25, %c0_26] : memref<1x32xf32, #tpu.memory_space<vmem>>, vector<1x32xf32>
      %35 = vector.broadcast %34 : vector<1x32xf32> to vector<8x32xf32>
      %36 = arith.addf %33, %35 : vector<8x32xf32>
      %c0_27 = arith.constant 0 : index
      %c0_28 = arith.constant 0 : index
      %c0_29 = arith.constant 0 : index
      %37 = vector.load %arg8[%c0_27, %c0_28, %c0_29] : memref<1x8x32xf32, #tpu.memory_space<vmem>>, vector<1x8x32xf32>
      %38 = vector.shape_cast %37 : vector<1x8x32xf32> to vector<8x32xf32>
      %39 = vector.shape_cast %36 : vector<8x32xf32> to vector<1x8x32xf32>
      tpu.vector_store %arg8[%c0_27, %c0_28, %c0_29], %39 {strides = array<i32>} : memref<1x8x32xf32, #tpu.memory_space<vmem>>, vector<1x8x32xf32>,
    } else {
    }
    return
  }
  func.func @transform_0(%arg0: i32, %arg1: i32, %arg2: i32) -> (i32, i32, i32, i32) {
    %c0_i32 = arith.constant 0 : i32
    %c0_i32_0 = arith.constant 0 : i32
    return %arg0, %arg2, %arg1, %c0_i32 : i32, i32, i32, i32
  }
  func.func @transform_1(%arg0: i32, %arg1: i32, %arg2: i32) -> (i32, i32, i32, i32) {
    %c0_i32 = arith.constant 0 : i32
    %c0_i32_0 = arith.constant 0 : i32
    %c0_i32_1 = arith.constant 0 : i32
    return %arg0, %arg2, %c0_i32, %c0_i32_0 : i32, i32, i32, i32
  }
  func.func @transform_2(%arg0: i32, %arg1: i32, %arg2: i32) -> (i32, i32, i32, i32) {
    %c0_i32 = arith.constant 0 : i32
    %c0_i32_0 = arith.constant 0 : i32
    %c0_i32_1 = arith.constant 0 : i32
    return %arg0, %arg2, %c0_i32, %c0_i32_0 : i32, i32, i32, i32
  }
  func.func @transform_3(%arg0: i32, %arg1: i32, %arg2: i32) -> (i32, i32, i32) {
    %c0_i32 = arith.constant 0 : i32
    %c0_i32_0 = arith.constant 0 : i32
    %c0_i32_1 = arith.constant 0 : i32
    %c0_i32_2 = arith.constant 0 : i32
    return %c0_i32, %c0_i32_0, %c0_i32_1 : i32, i32, i32
  }
  func.func @transform_4(%arg0: i32, %arg1: i32, %arg2: i32) -> (i32, i32) {
    %c0_i32 = arith.constant 0 : i32
    %c0_i32_0 = arith.constant 0 : i32
    %c0_i32_1 = arith.constant 0 : i32
    return %c0_i32, %c0_i32_0 : i32, i32
  }
  func.func @transform_5(%arg0: i32, %arg1: i32, %arg2: i32) -> (i32, i32, i32) {
    %c0_i32 = arith.constant 0 : i32
    %c0_i32_0 = arith.constant 0 : i32
    return %arg0, %arg1, %c0_i32 : i32, i32, i32
  }
}

</mosaic_0001>

<llo_original>
// kernel: tpu_custom_call.1
$region0: #{tpu_custom_call.1}
  #allocation0 [shape = 'u32[]', space=smem, size = 0x4, offset = 0x4, fixed_abs, tag = 'smem constant byte address 0x4 - core index']
  #allocation1 [shape = 'u32[72,128]{1,0:T(1,128)}', space=vmem, size = 0x9000, scoped, tag = 'internal scratch']
  #allocation2 [shape = 'f32[8,32]{1,0:T(8,128)}', space=vmem, size = 0x1000, scoped, tag = 'scratch operand']
  %s0 = inlined_call_operand.hbm [shape: bf16[2,4,8,8], index: 0, kind: input, shape index: {}]
  %s1 = inlined_call_operand.hbm [shape: bf16[2,4,8,8], index: 1, kind: input, shape index: {}]
  %s2 = inlined_call_operand.hbm [shape: bf16[2,4,8,8], index: 2, kind: input, shape index: {}]
  %s3 = inlined_call_operand.hbm [shape: bf16[4,8,32], index: 3, kind: input, shape index: {}]
  %s4 = inlined_call_operand.vmem [shape: f32[1,32], index: 4, kind: input, shape index: {}]
  %s5 = inlined_call_operand.hbm [shape: f32[2,8,32], index: 5, kind: output, shape index: {}]
  %s6 = sld [smem:[#allocation0]]
  $region77: #{tpu_custom_call.1} parent=0
    _
  %s8 = ssub.s32 1, %s6
  %s9 = scalar_select 0, %s8, %s6
  $region1: #{tpu_custom_call.1} parent=0
    #allocation3 [shape = 'u8[4096]{0}', space=vmem, size = 0x1000, scoped, tag = 'input window, operand 0']
    #allocation4 [shape = 's32[2]{0}', space=sflag, size = 0x8, scoped, tag = 'scoped memory for tpu_custom_call.1']
    #allocation5 [shape = 's32[2]{0}', space=sflag, size = 0x8, scoped, tag = 'scoped memory for tpu_custom_call.1']
    #allocation6 [shape = 'u8[4096]{0}', space=vmem, size = 0x1000, scoped, tag = 'input window, operand 1']
    #allocation7 [shape = 's32[2]{0}', space=sflag, size = 0x8, scoped, tag = 'scoped memory for tpu_custom_call.1']
    #allocation8 [shape = 'u8[4096]{0}', space=vmem, size = 0x1000, scoped, tag = 'input window, operand 2']
    #allocation9 [shape = 'u8[8192]{0}', space=vmem, size = 0x2000, scoped, tag = 'input window, operand 3, single buffered']
    #allocation10 [shape = 's32[1]{0}', space=sflag, size = 0x4, scoped, tag = 'scoped memory for tpu_custom_call.1']
    #allocation11 [shape = 'u8[8192]{0}', space=vmem, size = 0x2000, scoped, tag = 'output window, operand 0']
    %10 = vsyncpa [#allocation4], 0
    %s11 = scalar_lea.sflag [#allocation4], 1
    %12 = vsyncpa %s11, 0
    %13 = vsyncpa [#allocation7], 0
    %s14 = scalar_lea.sflag [#allocation7], 1
    %15 = vsyncpa %s14, 0
    %16 = vsyncpa [#allocation10], 0
    %17 = vsyncpa [#allocation5], 0
    %s18 = scalar_lea.sflag [#allocation5], 1
    %19 = vsyncpa %s18, 0
    loop: start=0, step=1, limit=10
    $region2: #{tpu_custom_call.1} parent=1 // loop_pre_header
      _
    $region3: #{tpu_custom_call.1} parent=1 // loop_header
      %s21 = sphi 0, %s25
      %p22 = scmp.ge.s32.totalorder %s21, 10
      %s28 = sphi 0, %s47
      %s29 = sphi 0, %s43
      %s30 = sphi 0, %s39
      %s31 = sphi 0, %s28
      %s32 = sphi 0, %s29
      %s33 = sphi 0, %s30
      %s34 = sphi 0, %s31
      %s35 = sphi 0, %s32
      %s36 = sphi 0, %s33
      %s54 = sphi 0, %s56
      %s57 = sphi 0, %s54
      %s58 = sphi 0, %s57
      %s74 = sphi 0, %s58
      %s82 = sphi 0, %s84
      %s85 = sphi 0, %s82
      %s86 = sphi 0, %s85
      %s102 = sphi 0, %s86
      %s110 = sphi 0, %s112
      %s113 = sphi 0, %s110
      %s114 = sphi 0, %s113
      %s130 = sphi 0, %s114
      %s134 = sphi 0, %s134
      %s136 = sphi 0, %s134
      %s137 = sphi 0, %s136
      %s151 = sphi 0, %s137
      %s155 = sphi 0, %s155
      %s157 = sphi 0, %s155
      %s158 = sphi 0, %s157
      %s172 = sphi 0, %s158
      %s180 = sphi 0, %s182
      %s183 = sphi 0, %s180
      %s184 = sphi 0, %s183
      %s200 = sphi 0, %s184
    $region4: #{tpu_custom_call.1} parent=1 // loop_header_branch
      %24 = sbr.rel (%p22) target = $region8
    $region5: #{tpu_custom_call.1} parent=1 // loop_body
      %s26 = ssub.s32 %s21, 1
      %s27 = ssub.s32 %s21, 2
      %s37 = sadd.s32 1, %s30
      %p38 = scmp.ge.s32.totalorder %s37, 4
      %s39 = scalar_select %p38, 0, %s37
      %s40 = sadd.s32 1, %s29
      %s41 = scalar_select %p38, %s40, %s29
      %p42 = scmp.ge.s32.totalorder %s41, 1
      %s43 = scalar_select %p42, 0, %s41
      %s44 = sadd.s32 1, %s28
      %s45 = scalar_select %p42, %s44, %s28
      %p46 = scmp.ge.s32.totalorder %s45, 2
      %s47 = scalar_select %p46, 0, %s45
      %s48 = ssub.s32 %s28, %s47
      %s49 = ssub.s32 %s30, %s39
      %s50 = sor.u32 %s48, %s49
      %s51 = ssub.s32 %s29, %s43
      %s52 = sor.u32 %s50, %s51
      %p53 = scmp.eq.s32.totalorder %s52, 0
      %s55 = sadd.s32 %s54, 1
      %s56 = scalar_select %p53, %s54, %s55
      %p59 = pneg %p53
      %p60 = scmp.eq.s32.totalorder %s21, 7
      %p61 = por %p59, %p60
      %p62 = scmp.ne.s32.totalorder %s54, %s57
      %p63 = scmp.eq.s32.totalorder %s21, 0
      %p64 = por %p62, %p63
      %p65 = scmp.ne.s32.totalorder %s54, %s57
      %p66 = scmp.eq.s32.totalorder %s26, 7
      %p67 = por %p65, %p66
      %p68 = scmp.ne.s32.totalorder %s57, %s58
      %p69 = scmp.eq.s32.totalorder %s26, 0
      %p70 = por %p68, %p69
      %p71 = scmp.ne.s32.totalorder %s57, %s58
      %p72 = scmp.eq.s32.totalorder %s27, 7
      %p73 = por %p71, %p72
      %p75 = scmp.ne.s32.totalorder %s58, %s74
      %p76 = scmp.eq.s32.totalorder %s27, 0
      %p77 = por %p75, %p76
      %s78 = ssub.s32 %s28, %s47
      %s79 = ssub.s32 %s30, %s39
      %s80 = sor.u32 %s78, %s79
      %p81 = scmp.eq.s32.totalorder %s80, 0
      %s83 = sadd.s32 %s82, 1
      %s84 = scalar_select %p81, %s82, %s83
      %p87 = pneg %p81
      %p88 = scmp.eq.s32.totalorder %s21, 7
      %p89 = por %p87, %p88
      %p90 = scmp.ne.s32.totalorder %s82, %s85
      %p91 = scmp.eq.s32.totalorder %s21, 0
      %p92 = por %p90, %p91
      %p93 = scmp.ne.s32.totalorder %s82, %s85
      %p94 = scmp.eq.s32.totalorder %s26, 7
      %p95 = por %p93, %p94
      %p96 = scmp.ne.s32.totalorder %s85, %s86
      %p97 = scmp.eq.s32.totalorder %s26, 0
      %p98 = por %p96, %p97
      %p99 = scmp.ne.s32.totalorder %s85, %s86
      %p100 = scmp.eq.s32.totalorder %s27, 7
      %p101 = por %p99, %p100
      %p103 = scmp.ne.s32.totalorder %s86, %s102
      %p104 = scmp.eq.s32.totalorder %s27, 0
      %p105 = por %p103, %p104
      %s106 = ssub.s32 %s28, %s47
      %s107 = ssub.s32 %s30, %s39
      %s108 = sor.u32 %s106, %s107
      %p109 = scmp.eq.s32.totalorder %s108, 0
      %s111 = sadd.s32 %s110, 1
      %s112 = scalar_select %p109, %s110, %s111
      %p115 = pneg %p109
      %p116 = scmp.eq.s32.totalorder %s21, 7
      %p117 = por %p115, %p116
      %p118 = scmp.ne.s32.totalorder %s110, %s113
      %p119 = scmp.eq.s32.totalorder %s21, 0
      %p120 = por %p118, %p119
      %p121 = scmp.ne.s32.totalorder %s110, %s113
      %p122 = scmp.eq.s32.totalorder %s26, 7
      %p123 = por %p121, %p122
      %p124 = scmp.ne.s32.totalorder %s113, %s114
      %p125 = scmp.eq.s32.totalorder %s26, 0
      %p126 = por %p124, %p125
      %p127 = scmp.ne.s32.totalorder %s113, %s114
      %p128 = scmp.eq.s32.totalorder %s27, 7
      %p129 = por %p127, %p128
      %p131 = scmp.ne.s32.totalorder %s114, %s130
      %p132 = scmp.eq.s32.totalorder %s27, 0
      %p133 = por %p131, %p132
      %s135 = sadd.s32 %s134, 1
      %p138 = scmp.eq.s32.totalorder %s21, 7
      %p139 = scmp.ne.s32.totalorder %s134, %s136
      %p140 = scmp.eq.s32.totalorder %s21, 0
      %p141 = por %p139, %p140
      %p142 = scmp.ne.s32.totalorder %s134, %s136
      %p143 = scmp.eq.s32.totalorder %s26, 7
      %p144 = por %p142, %p143
      %p145 = scmp.ne.s32.totalorder %s136, %s137
      %p146 = scmp.eq.s32.totalorder %s26, 0
      %p147 = por %p145, %p146
      %p148 = scmp.ne.s32.totalorder %s136, %s137
      %p149 = scmp.eq.s32.totalorder %s27, 7
      %p150 = por %p148, %p149
      %p152 = scmp.ne.s32.totalorder %s137, %s151
      %p153 = scmp.eq.s32.totalorder %s27, 0
      %p154 = por %p152, %p153
      %s156 = sadd.s32 %s155, 1
      %p159 = scmp.eq.s32.totalorder %s21, 7
      %p160 = scmp.ne.s32.totalorder %s155, %s157
      %p161 = scmp.eq.s32.totalorder %s21, 0
      %p162 = por %p160, %p161
      %p163 = scmp.ne.s32.totalorder %s155, %s157
      %p164 = scmp.eq.s32.totalorder %s26, 7
      %p165 = por %p163, %p164
      %p166 = scmp.ne.s32.totalorder %s157, %s158
      %p167 = scmp.eq.s32.totalorder %s26, 0
      %p168 = por %p166, %p167
      %p169 = scmp.ne.s32.totalorder %s157, %s158
      %p170 = scmp.eq.s32.totalorder %s27, 7
      %p171 = por %p169, %p170
      %p173 = scmp.ne.s32.totalorder %s158, %s172
      %p174 = scmp.eq.s32.totalorder %s27, 0
      %p175 = por %p173, %p174
      %s176 = ssub.s32 %s28, %s47
      %s177 = ssub.s32 %s29, %s43
      %s178 = sor.u32 %s176, %s177
      %p179 = scmp.eq.s32.totalorder %s178, 0
      %s181 = sadd.s32 %s180, 1
      %s182 = scalar_select %p179, %s180, %s181
      %p185 = pneg %p179
      %p186 = scmp.eq.s32.totalorder %s21, 7
      %p187 = por %p185, %p186
      %p188 = scmp.ne.s32.totalorder %s180, %s183
      %p189 = scmp.eq.s32.totalorder %s21, 0
      %p190 = por %p188, %p189
      %p191 = scmp.ne.s32.totalorder %s180, %s183
      %p192 = scmp.eq.s32.totalorder %s26, 7
      %p193 = por %p191, %p192
      %p194 = scmp.ne.s32.totalorder %s183, %s184
      %p195 = scmp.eq.s32.totalorder %s26, 0
      %p196 = por %p194, %p195
      %p197 = scmp.ne.s32.totalorder %s183, %s184
      %p198 = scmp.eq.s32.totalorder %s27, 7
      %p199 = por %p197, %p198
      %p201 = scmp.ne.s32.totalorder %s184, %s200
      %p202 = scmp.eq.s32.totalorder %s27, 0
      %p203 = por %p201, %p202
      %p204 = scmp.le.s32.totalorder 1, %s21
      %p205 = scmp.lt.s32.totalorder %s21, 9
      %p206 = pnand %p204, %p205
      %p207 = pneg %p206
      // Predicated region
      $region9: #{tpu_custom_call.1} parent=5 // pred_check
        _
      $region10: #{tpu_custom_call.1} parent=5 // pred_check_branch
        %209 = sbr.rel (%p206) target = $region12
      $region11: #{tpu_custom_call.1} parent=5 // pred_region
        %s210 = ssub.s32 %s21, 1
        // Predicated region
        $region13: #{tpu_custom_call.1} parent=11 // pred_check
          %p211 = pneg %p147
        $region14: #{tpu_custom_call.1} parent=11 // pred_check_branch
          %213 = sbr.rel (%p211) target = $region16
        $region15: #{tpu_custom_call.1} parent=11 // pred_region
          %215 = vsyncadd [#allocation10], 0
          %s216 = sshll.u32 %s3, 4
          %s217 = int_to_ptr.hbm [resolvable:$true] %s216
          %s218 = sshll.u32 [#allocation9], 4
          %s219 = int_to_ptr.vmem [resolvable:$true] %s218
          %224 = dma.hbm_to_vmem [thread:$0]  %s217, 256, %s219, [#allocation10], 64, 64, 4
        $region16: #{tpu_custom_call.1} parent=11 // pred_fallthru
          _
        // Predicated region
        $region17: #{tpu_custom_call.1} parent=11 // pred_check
          %p225 = pneg %p168
        $region18: #{tpu_custom_call.1} parent=11 // pred_check_branch
          %227 = sbr.rel (%p225) target = $region20
        $region19: #{tpu_custom_call.1} parent=11 // pred_region
          _
        $region20: #{tpu_custom_call.1} parent=11 // pred_fallthru
          _
      $region12: #{tpu_custom_call.1} parent=5 // pred_fallthru
        _
      %p228 = scmp.lt.s32.totalorder %s21, 8
      // Predicated region
      $region21: #{tpu_custom_call.1} parent=5 // pred_check
        %p229 = pneg %p228
      $region22: #{tpu_custom_call.1} parent=5 // pred_check_branch
        %231 = sbr.rel (%p229) target = $region24
      $region23: #{tpu_custom_call.1} parent=5 // pred_region
        // Predicated region
        $region25: #{tpu_custom_call.1} parent=23 // pred_check
          %p232 = pneg %p64
        $region26: #{tpu_custom_call.1} parent=23 // pred_check_branch
          %234 = sbr.rel (%p232) target = $region28
        $region27: #{tpu_custom_call.1} parent=23 // pred_region
          %s235 = sand.u32 %s54, 1
          %s236 = scalar_lea.sflag [#allocation4], %s235
          %s237 = sand.u32 %s54, 1
          %s238 = smul.addr %s237, 4
          %s239 = scalar_lea.vmem [#allocation3], %s238
          %241 = vsyncadd %s236, 0
          %s242 = sadd.s32 %s29, %s30
          %s243 = smul.addr %s28, 4
          %s244 = sadd.s32 %s242, %s243
          %s245 = smul.addr %s244, 4
          %s246 = scalar_lea.hbm %s0, %s245
          %s248 = sshll.u32 %s246, 4
          %s249 = int_to_ptr.hbm [resolvable:$true] %s248
          %s250 = sshll.u32 %s239, 4
          %s251 = int_to_ptr.vmem [resolvable:$true] %s250
          %253 = dma.hbm_to_vmem [thread:$0]  %s249, 64, %s251, %s236
        $region28: #{tpu_custom_call.1} parent=23 // pred_fallthru
          _
        // Predicated region
        $region29: #{tpu_custom_call.1} parent=23 // pred_check
          %p254 = pneg %p92
        $region30: #{tpu_custom_call.1} parent=23 // pred_check_branch
          %256 = sbr.rel (%p254) target = $region32
        $region31: #{tpu_custom_call.1} parent=23 // pred_region
          %s257 = sand.u32 %s21, 1
          %s258 = scalar_lea.sflag [#allocation7], %s257
          %s259 = sand.u32 %s82, 1
          %s260 = smul.addr %s259, 4
          %s261 = scalar_lea.vmem [#allocation6], %s260
          %263 = vsyncadd %s258, 0
          %s264 = smul.addr %s28, 4
          %s265 = sadd.s32 %s30, %s264
          %s266 = smul.addr %s265, 4
          %s267 = scalar_lea.hbm %s1, %s266
          %s269 = sshll.u32 %s267, 4
          %s270 = int_to_ptr.hbm [resolvable:$true] %s269
          %s271 = sshll.u32 %s261, 4
          %s272 = int_to_ptr.vmem [resolvable:$true] %s271
          %274 = dma.hbm_to_vmem [thread:$0]  %s270, 64, %s272, %s258
        $region32: #{tpu_custom_call.1} parent=23 // pred_fallthru
          _
        // Predicated region
        $region33: #{tpu_custom_call.1} parent=23 // pred_check
          %p275 = pneg %p120
        $region34: #{tpu_custom_call.1} parent=23 // pred_check_branch
          %277 = sbr.rel (%p275) target = $region36
        $region35: #{tpu_custom_call.1} parent=23 // pred_region
          %s278 = sand.u32 %s21, 1
          %s279 = scalar_lea.sflag [#allocation7], %s278
          %s280 = sand.u32 %s110, 1
          %s281 = smul.addr %s280, 4
          %s282 = scalar_lea.vmem [#allocation8], %s281
          %284 = vsyncadd %s279, 0
          %s285 = smul.addr %s28, 4
          %s286 = sadd.s32 %s30, %s285
          %s287 = smul.addr %s286, 4
          %s288 = scalar_lea.hbm %s2, %s287
          %s290 = sshll.u32 %s288, 4
          %s291 = int_to_ptr.hbm [resolvable:$true] %s290
          %s292 = sshll.u32 %s282, 4
          %s293 = int_to_ptr.vmem [resolvable:$true] %s292
          %295 = dma.hbm_to_vmem [thread:$0]  %s291, 64, %s293, %s279
        $region36: #{tpu_custom_call.1} parent=23 // pred_fallthru
          _
      $region24: #{tpu_custom_call.1} parent=5 // pred_fallthru
        _
      %p296 = scmp.le.s32.totalorder 1, %s21
      %p297 = scmp.lt.s32.totalorder %s21, 9
      %p298 = pnand %p296, %p297
      %p299 = pneg %p298
      // Predicated region
      $region37: #{tpu_custom_call.1} parent=5 // pred_check
        _
      $region38: #{tpu_custom_call.1} parent=5 // pred_check_branch
        %301 = sbr.rel (%p298) target = $region40
      $region39: #{tpu_custom_call.1} parent=5 // pred_region
        %s302 = ssub.s32 %s21, 1
        %s303 = sand.u32 %s57, 1
        %s304 = scalar_lea.sflag [#allocation4], %s303
        %s305 = sand.u32 %s57, 1
        %s306 = smul.addr %s305, 4
        %s307 = scalar_lea.vmem [#allocation3], %s306
        // Predicated region
        $region41: #{tpu_custom_call.1} parent=39 // pred_check
          %p308 = pneg %p70
        $region42: #{tpu_custom_call.1} parent=39 // pred_check_branch
          %310 = sbr.rel (%p308) target = $region44
        $region43: #{tpu_custom_call.1} parent=39 // pred_region
          %312 = dma.done %s304, 64
        $region44: #{tpu_custom_call.1} parent=39 // pred_fallthru
          _
        %s313 = sand.u32 %s26, 1
        %s314 = scalar_lea.sflag [#allocation7], %s313
        %s315 = sand.u32 %s85, 1
        %s316 = smul.addr %s315, 4
        %s317 = scalar_lea.vmem [#allocation6], %s316
        // Predicated region
        $region45: #{tpu_custom_call.1} parent=39 // pred_check
          %p318 = pneg %p98
        $region46: #{tpu_custom_call.1} parent=39 // pred_check_branch
          %320 = sbr.rel (%p318) target = $region48
        $region47: #{tpu_custom_call.1} parent=39 // pred_region
          %322 = dma.done %s314, 64
        $region48: #{tpu_custom_call.1} parent=39 // pred_fallthru
          _
        %s323 = sand.u32 %s26, 1
        %s324 = scalar_lea.sflag [#allocation7], %s323
        %s325 = sand.u32 %s113, 1
        %s326 = smul.addr %s325, 4
        %s327 = scalar_lea.vmem [#allocation8], %s326
        // Predicated region
        $region49: #{tpu_custom_call.1} parent=39 // pred_check
          %p328 = pneg %p126
        $region50: #{tpu_custom_call.1} parent=39 // pred_check_branch
          %330 = sbr.rel (%p328) target = $region52
        $region51: #{tpu_custom_call.1} parent=39 // pred_region
          %332 = dma.done %s324, 64
        $region52: #{tpu_custom_call.1} parent=39 // pred_fallthru
          _
        // Predicated region
        $region53: #{tpu_custom_call.1} parent=39 // pred_check
          %p333 = pneg %p147
        $region54: #{tpu_custom_call.1} parent=39 // pred_check_branch
          %335 = sbr.rel (%p333) target = $region56
        $region55: #{tpu_custom_call.1} parent=39 // pred_region
          %337 = dma.done [#allocation10], 256
        $region56: #{tpu_custom_call.1} parent=39 // pred_fallthru
          _
        %s338 = sand.u32 %s57, 1
        %s339 = scalar_lea.sflag [#allocation4], %s338
        %s340 = sand.u32 %s57, 1
        %s341 = smul.addr %s340, 4
        %s342 = scalar_lea.vmem [#allocation3], %s341
        %p343 = pneg %p70
        %p344 = pneg %p67
        %s345 = sand.u32 %s26, 1
        %s346 = scalar_lea.sflag [#allocation7], %s345
        %s347 = sand.u32 %s85, 1
        %s348 = smul.addr %s347, 4
        %s349 = scalar_lea.vmem [#allocation6], %s348
        %p350 = pneg %p98
        %p351 = pneg %p95
        %s352 = sand.u32 %s26, 1
        %s353 = scalar_lea.sflag [#allocation7], %s352
        %s354 = sand.u32 %s113, 1
        %s355 = smul.addr %s354, 4
        %s356 = scalar_lea.vmem [#allocation8], %s355
        %p357 = pneg %p126
        %p358 = pneg %p123
        %p359 = pneg %p147
        %p360 = pneg %p144
        %p361 = pneg %p168
        %p362 = pneg %p165
        %p363 = pneg %p196
        %p364 = pneg %p193
        %s365 = sand.u32 %s183, 1
        %s366 = scalar_lea.sflag [#allocation5], %s365
        %s367 = sand.u32 %s183, 1
        %s368 = smul.addr %s367, 8
        %s369 = scalar_lea.vmem [#allocation11], %s368
        %p371 = scmp.eq.s32.totalorder %s33, 0
        // Predicated region
        $region57: #{tpu_custom_call.1} parent=39 // pred_check
          %p372 = pneg %p371
        $region58: #{tpu_custom_call.1} parent=39 // pred_check_branch
          %374 = sbr.rel (%p372) target = $region60
        $region59: #{tpu_custom_call.1} parent=39 // pred_region
          %vm375 = vcmask 261120
          %376 = vst.msk [vmem:[#allocation2] sm:$0xff] %vm375, 0.0
        $region60: #{tpu_custom_call.1} parent=39 // pred_fallthru
          _
        %v377 = vld [vmem:[%s307] sm:$0xf]
        %v378 = vld [vmem:[%s317] sm:$0xf]
        %v379 = vld [vmem:[%s327] sm:$0xf]
        %vm380 = vcmask 64512
        %v382 = vsel %vm380, %v377, 0
        %v385 = vsel %vm380, %v378, 0
        %387 = vmatpush.bf16.xpose.msra.mxu0 0
        %388 = vmatpush.bf16.xpose.msra.mxu0 0
        %389 = vmatpush.bf16.xpose.msra.mxu0 0
        %390 = vmatpush.bf16.xpose.msra.mxu0 0
        %391 = vmatpush.bf16.xpose.msra.mxu0 0
        %392 = vmatpush.bf16.xpose.msra.mxu0 0
        %393 = vmatpush.bf16.xpose.msra.mxu0 0
        %394 = vmatpush.bf16.xpose.msra.mxu0 %v385
        %395 = vmatmul.bf16.gmra.mxu0 %v382
        %v396 = vpop.f32.mrf.mxu0
        %v397 = vadd.f32 0.0, %v396
        %v398 = vpop.f32.mrf.mxu0
        %399 = vdwg.mxu0
        %v400 = vsel %vm380, %v397, -inf
        %401 = vmax.xlane.f32.xlu0 %v400
        %v402 = vpop.xlane.xlu0 %401
        %v403 = vsub.f32 %v397, %v402
        %v404 = vmul.f32 %v403, 1.442695
        %v405 = vpow.pop %v404
        %v406 = vsel %vm380, %v405, 0.0
        %407 = vadd.xlane.f32.xlu0 %v406
        %v408 = vpop.xlane.xlu0 %407
        %v409 = vrcp.pop %v408
        %v410 = vmul.f32 %v405, %v409
        %v411 = vpack.c.bf16 %v410, %v410
        %v413 = vsel %vm380, %v411, 0
        %vm415 = vcmask 1043456
        %v417 = vsel %vm415, %v379, 0
        %419 = vmatpush.bf16.msra.mxu0 0
        %420 = vmatpush.bf16.msra.mxu0 0
        %421 = vmatpush.bf16.msra.mxu0 0
        %422 = vmatpush.bf16.msra.mxu0 0
        %423 = vmatpush.bf16.msra.mxu0 0
        %424 = vmatpush.bf16.msra.mxu0 0
        %425 = vmatpush.bf16.msra.mxu0 0
        %426 = vmatpush.bf16.msra.mxu0 %v417
        %427 = vmatmul.bf16.gmra.mxu0 %v413
        %v428 = vpop.f32.mrf.mxu0
        %v429 = vadd.f32 0.0, %v428
        %v430 = vpop.f32.mrf.mxu0
        %431 = vdwg.mxu0
        %v432 = vld [vmem:[#allocation2] sm:$0xff]
        %v433 = vpack.c.bf16 %v429, %v429
        %s434 = smul.addr %s33, 4
        %s435 = scalar_lea.vmem [#allocation9], %s434
        %v436 = vld [vmem:[%s435] sm:$0xf]
        %v438 = vsel %vm380, %v433, 0
        %v441 = vsel %vm415, %v436, 0
        %443 = vmatpush.bf16.msra.mxu0 0
        %444 = vmatpush.bf16.msra.mxu0 0
        %445 = vmatpush.bf16.msra.mxu0 0
        %446 = vmatpush.bf16.msra.mxu0 0
        %447 = vmatpush.bf16.msra.mxu0 0
        %448 = vmatpush.bf16.msra.mxu0 0
        %449 = vmatpush.bf16.msra.mxu0 0
        %450 = vmatpush.bf16.msra.mxu0 %v441
        %451 = vmatmul.bf16.gmra.mxu0 %v438
        %v452 = vpop.f32.mrf.mxu0
        %v453 = vadd.f32 0.0, %v452
        %v454 = vpop.f32.mrf.mxu0
        %455 = vdwg.mxu0
        %v456 = vadd.f32 %v432, %v453
        %vm457 = vcmask 261120
        %458 = vst.msk [vmem:[#allocation2] sm:$0xff] %vm457, %v456
        %p459 = scmp.eq.s32.totalorder %s33, 3
        // Predicated region
        $region61: #{tpu_custom_call.1} parent=39 // pred_check
          %p460 = pneg %p459
        $region62: #{tpu_custom_call.1} parent=39 // pred_check_branch
          %462 = sbr.rel (%p460) target = $region64
        $region63: #{tpu_custom_call.1} parent=39 // pred_region
          %v463 = vld [vmem:[#allocation2] sm:$0xff]
          %v464 = vld [vmem:[%s4] sm:$0x1]
          %v466 = vperm.slane %v464, 0
          %v468 = vadd.f32 %v463, %v466
          %469 = vst.msk [vmem:[%s369] sm:$0xff] %vm457, %v468
        $region64: #{tpu_custom_call.1} parent=39 // pred_fallthru
          _
        %s470 = sand.u32 %s183, 1
        %s471 = scalar_lea.sflag [#allocation5], %s470
        %s472 = sand.u32 %s183, 1
        %s473 = smul.addr %s472, 8
        %s474 = scalar_lea.vmem [#allocation11], %s473
        // Predicated region
        $region65: #{tpu_custom_call.1} parent=39 // pred_check
          %p475 = pneg %p193
        $region66: #{tpu_custom_call.1} parent=39 // pred_check_branch
          %477 = sbr.rel (%p475) target = $region68
        $region67: #{tpu_custom_call.1} parent=39 // pred_region
          %479 = vsyncadd %s471, 0
          %s480 = sadd.s32 %s32, %s31
          %s481 = smul.addr %s480, 8
          %s482 = scalar_lea.hbm %s5, %s481
          %s484 = sshll.u32 %s474, 4
          %s485 = int_to_ptr.vmem [resolvable:$true] %s484
          %s486 = sshll.u32 %s482, 4
          %s487 = int_to_ptr.hbm [resolvable:$true] %s486
          %489 = dma.vmem_to_hbm [thread:$0]  %s485, 128, %s487, %s471
        $region68: #{tpu_custom_call.1} parent=39 // pred_fallthru
          _
      $region40: #{tpu_custom_call.1} parent=5 // pred_fallthru
        _
      %p490 = scmp.le.s32.totalorder 2, %s21
      // Predicated region
      $region69: #{tpu_custom_call.1} parent=5 // pred_check
        %p491 = pneg %p490
      $region70: #{tpu_custom_call.1} parent=5 // pred_check_branch
        %493 = sbr.rel (%p491) target = $region72
      $region71: #{tpu_custom_call.1} parent=5 // pred_region
        %s494 = ssub.s32 %s21, 2
        // Predicated region
        $region73: #{tpu_custom_call.1} parent=71 // pred_check
          %p495 = pneg %p199
        $region74: #{tpu_custom_call.1} parent=71 // pred_check_branch
          %497 = sbr.rel (%p495) target = $region76
        $region75: #{tpu_custom_call.1} parent=71 // pred_region
          %s498 = sand.u32 %s184, 1
          %s499 = scalar_lea.sflag [#allocation5], %s498
          %s500 = sand.u32 %s184, 1
          %s501 = smul.addr %s500, 8
          %s502 = scalar_lea.vmem [#allocation11], %s501
          %504 = dma.done %s499, 128
        $region76: #{tpu_custom_call.1} parent=71 // pred_fallthru
          _
      $region72: #{tpu_custom_call.1} parent=5 // pred_fallthru
        _
    $region6: #{tpu_custom_call.1} parent=1 // loop_footer
      %s25 = sadd.s32 1, %s21
    $region7: #{tpu_custom_call.1} parent=1 // loop_footer_branch
      %20 = sbr.rel target = $region3
    $region8: #{tpu_custom_call.1} parent=1 // loop_exit
      _
    %505 = vsyncpa [#allocation4], 1
    %s506 = scalar_lea.sflag [#allocation4], 1
    %507 = vsyncpa %s506, 1
    %508 = vsyncpa [#allocation7], 1
    %s509 = scalar_lea.sflag [#allocation7], 1
    %510 = vsyncpa %s509, 1
    %511 = vsyncpa [#allocation10], 1
    %512 = vsyncpa [#allocation5], 1
    %s513 = scalar_lea.sflag [#allocation5], 1
    %514 = vsyncpa %s513, 1

</llo_original>
